<compile_context>
chip_gen: v7x
topology: tpu7x:2x2x1
jax: 0.10.0
libtpu: 0.0.40
codegen_flags: <defaults>
</compile_context>

<pallas_src>
import functools

import jax
import jax.numpy as jnp
from jax.experimental import pallas as pl
from jax.experimental.pallas import tpu as pltpu

# ----------------------------- module hyper-params -----------------------------
IN_PLANES = 16
OUT_PLANES = 32
KERNEL_SIZE = 3
KERNEL_NUM = 4
GROUPS = 1
REDUCTION = 0.0625
MIN_CHANNEL = 16
ATTN_CH = max(int(IN_PLANES * REDUCTION), MIN_CHANNEL)  # attention_channel
TEMPERATURE = 1.0
LN_EPS = 1e-5

# Fused head layout (columns of the single (A, OUT_PAD) head matmul).
CH_START = 0
FI_START = CH_START + IN_PLANES                       # 16
SP_START = FI_START + OUT_PLANES                      # 48
KE_START = SP_START + KERNEL_SIZE * KERNEL_SIZE       # 57
OUT_TOTAL = KE_START + KERNEL_NUM                     # 61
OUT_PAD = 128                                         # lane-dense output width

# ----------------------------- tiling knobs ------------------------------------
X_BLOCK_BUDGET = 12 * 1024 * 1024    # budget for the DOUBLE-BUFFERED x block
MAX_HW_TILE = 2048                   # chunk cap (keeps v7x's 64 MiB VMEM happy)
VMEM_LIMIT_BYTES = 48 * 1024 * 1024  # explicit scoped-VMEM limit (safe on v5e/v6e/v7x)


# ------------------------------ kernel helpers ----------------------------------
def _tree_slab_sum(x_ref, lo, hi):
    """Pairwise-tree sum of 128-lane slabs [lo, hi) read straight off the ref.

    Each leaf is a fresh (b_tile, C, 128) read, so only O(log(hi-lo)) slab
    values are live at once (vs. loading the whole block into one value)."""
    if hi - lo == 1:
        return x_ref[:, :, lo * 128:(lo + 1) * 128]
    mid = (lo + hi) // 2
    return _tree_slab_sum(x_ref, lo, mid) + _tree_slab_sum(x_ref, mid, hi)


def _heads_finalize(pooled, w_fc_ref, ln_w_ref, ln_b_ref, w_heads_ref,
                    b_heads_ref, out_ref):
    """fc -> LayerNorm -> ReLU -> fused 4-head matmul -> sigmoid / softmax.
    Runs once per batch tile; writes one lane-dense (b_tile, 128) store."""
    inv_t = jnp.float32(1.0 / TEMPERATURE)

    # fc: 1x1 conv (no bias) == matmul.
    h = jnp.dot(pooled, w_fc_ref[...], preferred_element_type=jnp.float32)

    # LayerNorm over [A, 1, 1] (population variance, eps=1e-5).
    mu = jnp.mean(h, axis=-1, keepdims=True)
    var = jnp.mean((h - mu) * (h - mu), axis=-1, keepdims=True)
    h = (h - mu) * jax.lax.rsqrt(var + jnp.float32(LN_EPS))
    h = h * ln_w_ref[...] + ln_b_ref[...]

    # ReLU.
    h = jnp.maximum(h, jnp.float32(0.0))

    # All four heads in ONE MXU pass.
    z = jnp.dot(h, w_heads_ref[...], preferred_element_type=jnp.float32)
    z = (z + b_heads_ref[...]) * inv_t                 # (b_tile, OUT_PAD)

    sig = jax.nn.sigmoid(z)                            # channel / filter / spatial

    # Kernel attention: softmax over the 4 kernel-logit columns only.
    col = jax.lax.broadcasted_iota(jnp.int32, z.shape, 1)
    is_ke = (col >= KE_START) & (col < KE_START + KERNEL_NUM)
    ke_logits = jnp.where(is_ke, z, jnp.float32(-1e30))
    ke_max = jnp.max(ke_logits, axis=-1, keepdims=True)
    ke_exp = jnp.where(is_ke, jnp.exp(ke_logits - ke_max), jnp.float32(0.0))
    ke_sum = jnp.sum(ke_exp, axis=-1, keepdims=True)
    ke = ke_exp / ke_sum          # exact reciprocal: once per tile, 4 columns

    out_ref[...] = jnp.where(is_ke, ke, sig)


# ------------------------------ Pallas kernels ----------------------------------
def _attention_single_kernel(x_ref, w_fc_ref, ln_w_ref, ln_b_ref, w_heads_ref,
                             b_heads_ref, out_ref, *, hw, inv_hw):
    """Single HW chunk (block dim == full HW): pool + MLP + heads in one pass,
    no accumulator scratch, no init/RMW."""
    full = hw // 128
    rem = hw - full * 128
    if full > 0:
        pooled = jnp.sum(_tree_slab_sum(x_ref, 0, full), axis=-1)
        if rem:
            # Narrow (<128-lane) remainder slice stays within the ref bounds.
            pooled = pooled + jnp.sum(x_ref[:, :, full * 128:hw], axis=-1)
    else:
        pooled = jnp.sum(x_ref[...], axis=-1)
    pooled = pooled * jnp.float32(inv_hw)
    _heads_finalize(pooled, w_fc_ref, ln_w_ref, ln_b_ref, w_heads_ref,
                    b_heads_ref, out_ref)


def _attention_chunked_kernel(x_ref, w_fc_ref, ln_w_ref, ln_b_ref, w_heads_ref,
                              b_heads_ref, out_ref, acc_ref, *,
                              inv_hw, n_slabs, tail):
    """Multi-chunk HW reduction (no wrapper padding). `tail` = number of valid
    lanes in the LAST chunk (static); its out-of-range lanes are masked here."""
    s = pl.program_id(1)
    last = pl.num_programs(1) - 1

    # ---- init accumulator at the first HW chunk ----
    @pl.when(s == 0)
    def _():
        acc_ref[...] = jnp.zeros_like(acc_ref)

    def add_full_chunk():
        acc_ref[...] += _tree_slab_sum(x_ref, 0, n_slabs)

    def add_tail_chunk():
        full = tail // 128
        rem = tail - full * 128
        partial = None
        if rem:
            p = x_ref[:, :, full * 128:(full + 1) * 128]
            lane = jax.lax.broadcasted_iota(jnp.int32, p.shape, 2)
            partial = jnp.where(lane < rem, p, jnp.float32(0.0))
        if full > 0:
            total = _tree_slab_sum(x_ref, 0, full)
            if partial is not None:
                total = total + partial
        else:
            total = partial
        acc_ref[...] += total

    if tail == n_slabs * 128:
        add_full_chunk()                  # HW divides evenly: every chunk full
    else:
        @pl.when(s != last)
        def _():
            add_full_chunk()

        @pl.when(s == last)
        def _():
            add_tail_chunk()

    # ---- finalize: single cross-lane reduce + tiny MLP + fused heads ----
    @pl.when(s == last)
    def _():
        pooled = jnp.sum(acc_ref[...], axis=-1) * jnp.float32(inv_hw)
        _heads_finalize(pooled, w_fc_ref, ln_w_ref, ln_b_ref, w_heads_ref,
                        b_heads_ref, out_ref)


# ------------------------------ params / wrapper --------------------------------
def _init_params(key):
    """Deterministic init matching Attention._initialize_weights():
    kaiming_normal(fan_out) for conv weights, zeros for conv biases,
    LayerNorm weight=1 / bias=0 (default)."""
    ks = jax.random.split(key, 5)

    def kaiming_fan_out(k, out_ch, in_ch):
        std = (2.0 / out_ch) ** 0.5                    # 1x1 conv: fan_out = out_ch
        return jax.random.normal(k, (out_ch, in_ch), dtype=jnp.float32) * std

    return {
        "w_fc": kaiming_fan_out(ks[0], ATTN_CH, IN_PLANES),          # (A, C_in)
        "ln_w": jnp.ones((ATTN_CH,), jnp.float32),
        "ln_b": jnp.zeros((ATTN_CH,), jnp.float32),
        "w_channel": kaiming_fan_out(ks[1], IN_PLANES, ATTN_CH),
        "b_channel": jnp.zeros((IN_PLANES,), jnp.float32),
        "w_filter": kaiming_fan_out(ks[2], OUT_PLANES, ATTN_CH),
        "b_filter": jnp.zeros((OUT_PLANES,), jnp.float32),
        "w_spatial": kaiming_fan_out(ks[3], KERNEL_SIZE * KERNEL_SIZE, ATTN_CH),
        "b_spatial": jnp.zeros((KERNEL_SIZE * KERNEL_SIZE,), jnp.float32),
        "w_kernel": kaiming_fan_out(ks[4], KERNEL_NUM, ATTN_CH),
        "b_kernel": jnp.zeros((KERNEL_NUM,), jnp.float32),
    }


def _pick_batch_tile(batch):
    # Cap at batch // 2 (when batch >= 4) so the "parallel" batch grid axis
    # has >= 2 steps and spans both TensorCores on v7x; cap at 16 so per-slab
    # values stay a few vregs deep.
    cap = batch // 2 if batch >= 4 else batch
    cap = max(1, min(cap, 16))
    for cand in (16, 8, 4, 2, 1):
        if cand <= cap and batch % cand == 0:
            return cand
    return 1


@functools.partial(jax.jit, static_argnames=("x_block_budget_bytes",))
def attention_forward(x, params, *, x_block_budget_bytes=X_BLOCK_BUDGET):
    """x: (B, C_in, H, W) float32 NCHW.  Returns the 4 attention tensors with
    the exact PyTorch output shapes."""
    B, C, H, W = x.shape
    assert C == IN_PLANES
    HW = H * W

    b_tile = _pick_batch_tile(B)
    x_flat = x.reshape(B, C, HW).astype(jnp.float32)   # view reshape, NO padding

    # ---- fuse the four head 1x1 convs: (A, 61) -> lane-padded (A, 128) ----
    w_heads = jnp.concatenate(
        [params["w_channel"].T, params["w_filter"].T,
         params["w_spatial"].T, params["w_kernel"].T], axis=1)       # (A, 61)
    w_heads = jnp.pad(w_heads, ((0, 0), (0, OUT_PAD - OUT_TOTAL)))
    b_heads = jnp.concatenate(
        [params["b_channel"], params["b_filter"],
         params["b_spatial"], params["b_kernel"]]).reshape(1, OUT_TOTAL)
    b_heads = jnp.pad(b_heads, ((0, 0), (0, OUT_PAD - OUT_TOTAL)))

    args = (
        x_flat,
        params["w_fc"].T,                     # (C_in, A)
        params["ln_w"].reshape(1, ATTN_CH),
        params["ln_b"].reshape(1, ATTN_CH),
        w_heads,                              # (A, OUT_PAD)
        b_heads,                              # (1, OUT_PAD)
    )

    single_chunk = 2 * b_tile * C * HW * 4 <= x_block_budget_bytes

    if single_chunk:
        # One HW chunk: block dim == full array dim (exempt from 128 rule).
        grid = (B // b_tile,)
        kernel = functools.partial(_attention_single_kernel,
                                   hw=HW, inv_hw=1.0 / float(HW))
        const = lambda b: (0, 0)              # weights: resident across grid
        in_specs = [
            pl.BlockSpec((b_tile, C, HW), lambda b: (b, 0, 0)),
            pl.BlockSpec((C, ATTN_CH), const),
            pl.BlockSpec((1, ATTN_CH), const),
            pl.BlockSpec((1, ATTN_CH), const),
            pl.BlockSpec((ATTN_CH, OUT_PAD), const),
            pl.BlockSpec((1, OUT_PAD), const),
        ]
        out_spec = pl.BlockSpec((b_tile, OUT_PAD), lambda b: (b, 0))
        scratch = []
        dims = ("parallel",)
    else:
        # Multi-chunk streaming; last (ragged) chunk is masked in-kernel.
        hw_tile = (x_block_budget_bytes // (2 * b_tile * C * 4)) // 128 * 128
        hw_tile = max(128, min(MAX_HW_TILE, hw_tile))
        n_chunks = pl.cdiv(HW, hw_tile)
        tail = HW - (n_chunks - 1) * hw_tile            # valid lanes, last chunk
        grid = (B // b_tile, n_chunks)
        kernel = functools.partial(_attention_chunked_kernel,
                                   inv_hw=1.0 / float(HW),
                                   n_slabs=hw_tile // 128, tail=tail)
        const = lambda b, s: (0, 0)
        in_specs = [
            pl.BlockSpec((b_tile, C, hw_tile), lambda b, s: (b, 0, s)),
            pl.BlockSpec((C, ATTN_CH), const),
            pl.BlockSpec((1, ATTN_CH), const),
            pl.BlockSpec((1, ATTN_CH), const),
            pl.BlockSpec((ATTN_CH, OUT_PAD), const),
            pl.BlockSpec((1, OUT_PAD), const),
        ]
        # NOTE: out block index is constant along s (resident output); the
        # write happens only under pl.when(s == last). Do not reorder axes.
        out_spec = pl.BlockSpec((b_tile, OUT_PAD), lambda b, s: (b, 0))
        scratch = [pltpu.VMEM((b_tile, C, 128), jnp.float32)]
        dims = ("parallel", "arbitrary")

    weight_bytes = 4 * (C * ATTN_CH + 2 * ATTN_CH + ATTN_CH * OUT_PAD + OUT_PAD)
    cost = pl.CostEstimate(
        flops=int(B * C * HW + 2 * B * (C * ATTN_CH + ATTN_CH * OUT_TOTAL)),
        transcendentals=int(B * (OUT_TOTAL + KERNEL_NUM)),
        bytes_accessed=int(4 * B * C * HW + weight_bytes + 4 * B * OUT_PAD),
    )

    out = pl.pallas_call(
        kernel,
        out_shape=jax.ShapeDtypeStruct((B, OUT_PAD), jnp.float32),
        grid_spec=pltpu.PrefetchScalarGridSpec(
            num_scalar_prefetch=0,
            grid=grid,
            in_specs=in_specs,
            out_specs=out_spec,
            scratch_shapes=scratch,
        ),
        compiler_params=pltpu.CompilerParams(
            dimension_semantics=dims,
            vmem_limit_bytes=VMEM_LIMIT_BYTES),
        cost_estimate=cost,
    )(*args)

    # ---- split the fused lane-dense output; match PyTorch .view() shapes ----
    channel_attention = out[:, CH_START:FI_START].reshape(B, IN_PLANES, 1, 1)
    filter_attention = out[:, FI_START:SP_START].reshape(B, OUT_PLANES, 1, 1)
    spatial_attention = out[:, SP_START:KE_START].reshape(
        B, 1, 1, 1, KERNEL_SIZE, KERNEL_SIZE)
    kernel_attention = out[:, KE_START:OUT_TOTAL].reshape(
        B, KERNEL_NUM, 1, 1, 1, 1)
    return channel_attention, filter_attention, spatial_attention, kernel_attention


# ------------------------------ reference / checks ------------------------------
def _reference_forward(x, params):
    """Pure-JAX reference of the PyTorch forward, for a sanity check."""
    pooled = jnp.mean(x, axis=(2, 3))                                  # (B, C_in)
    h = pooled @ params["w_fc"].T                                      # (B, A)
    mu = jnp.mean(h, axis=-1, keepdims=True)
    var = jnp.mean((h - mu) ** 2, axis=-1, keepdims=True)
    h = (h - mu) / jnp.sqrt(var + LN_EPS)
    h = h * params["ln_w"][None, :] + params["ln_b"][None, :]
    h = jnp.maximum(h, 0.0)
    ch = jax.nn.sigmoid((h @ params["w_channel"].T + params["b_channel"]) / TEMPERATURE)
    fi = jax.nn.sigmoid((h @ params["w_filter"].T + params["b_filter"]) / TEMPERATURE)
    sp = jax.nn.sigmoid((h @ params["w_spatial"].T + params["b_spatial"]) / TEMPERATURE)
    ke = jax.nn.softmax((h @ params["w_kernel"].T + params["b_kernel"]) / TEMPERATURE, axis=-1)
    B = x.shape[0]
    return (
        ch.reshape(B, IN_PLANES, 1, 1),
        fi.reshape(B, OUT_PLANES, 1, 1),
        sp.reshape(B, 1, 1, 1, KERNEL_SIZE, KERNEL_SIZE),
        ke.reshape(B, KERNEL_NUM, 1, 1, 1, 1),
    )


def _check(outs, refs):
    for o, r in zip(outs, refs):
        assert o.shape == r.shape, (o.shape, r.shape)
        assert jnp.allclose(o, r, atol=1e-4, rtol=1e-4), "mismatch vs reference"


if __name__ == "__main__":
    key = jax.random.PRNGKey(0)
    k_param, k1, k2, k3, k4 = jax.random.split(key, 5)
    params = _init_params(k_param)

    # 1) single-pass path, HW a multiple of 128.
    x1 = jax.random.normal(k1, (2, IN_PLANES, 16, 16), dtype=jnp.float32)
    outs1 = jax.block_until_ready(attention_forward(x1, params))
    _check(outs1, _reference_forward(x1, params))

    # 2) larger single-pass block; batch grid spans 2 "parallel" steps.
    x2 = jax.random.normal(k2, (8, IN_PLANES, 48, 48), dtype=jnp.float32)
    outs2 = jax.block_until_ready(attention_forward(x2, params))
    _check(outs2, _reference_forward(x2, params))

    # 3) single-pass path with HW NOT a multiple of 128 (partial last slab).
    x3 = jax.random.normal(k3, (2, IN_PLANES, 12, 12), dtype=jnp.float32)
    outs3 = jax.block_until_ready(attention_forward(x3, params))
    _check(outs3, _reference_forward(x3, params))

    # 4) force the chunked path (tiny block budget): multi-chunk grid reduction
    #    with an in-kernel-masked ragged tail chunk (no wrapper padding).
    x4 = jax.random.normal(k4, (4, IN_PLANES, 40, 40), dtype=jnp.float32)
    outs4 = jax.block_until_ready(
        attention_forward(x4, params, x_block_budget_bytes=256 * 1024))
    _check(outs4, _reference_forward(x4, params))

    print("KERNEL_OK")
</pallas_src>

<mosaic_0001>
module attributes {stable_mosaic.version = 11 : i64} {
  func.func @_attention_single_kernel(%arg0: i32, %arg1: memref<2x16x256xf32, #tpu.memory_space<vmem>>, %arg2: memref<16x16xf32, #tpu.memory_space<vmem>>, %arg3: memref<1x16xf32, #tpu.memory_space<vmem>>, %arg4: memref<1x16xf32, #tpu.memory_space<vmem>>, %arg5: memref<16x128xf32, #tpu.memory_space<vmem>>, %arg6: memref<1x128xf32, #tpu.memory_space<vmem>>, %arg7: memref<2x128xf32, #tpu.memory_space<vmem>>) attributes {dimension_semantics = [#tpu.dimension_semantics<parallel>], iteration_bounds = array<i64: 1>, scalar_prefetch = 0 : i64, scratch_operands = 0 : i64, tpu.core_type = #tpu.core_type<tc>, window_params = [{transform_indices = @transform_0, window_bounds = array<i64: 2, 16, 256>}, {pipeline_mode = #tpu.pipeline_mode<synchronous>, transform_indices = @transform_1, window_bounds = array<i64: 16, 16>}, {pipeline_mode = #tpu.pipeline_mode<synchronous>, transform_indices = @transform_2, window_bounds = array<i64: 1, 16>}, {pipeline_mode = #tpu.pipeline_mode<synchronous>, transform_indices = @transform_3, window_bounds = array<i64: 1, 16>}, {pipeline_mode = #tpu.pipeline_mode<synchronous>, transform_indices = @transform_4, window_bounds = array<i64: 16, 128>}, {pipeline_mode = #tpu.pipeline_mode<synchronous>, transform_indices = @transform_5, window_bounds = array<i64: 1, 128>}, {transform_indices = @transform_6, window_bounds = array<i64: 2, 128>}]} {
    %c0 = arith.constant 0 : index
    %c0_0 = arith.constant 0 : index
    %c0_1 = arith.constant 0 : index
    %0 = vector.load %arg1[%c0, %c0_0, %c0_1] : memref<2x16x256xf32, #tpu.memory_space<vmem>>, vector<2x16x128xf32>
    %c0_2 = arith.constant 0 : index
    %c0_3 = arith.constant 0 : index
    %c128 = arith.constant 128 : index
    %1 = vector.load %arg1[%c0_2, %c0_3, %c128] : memref<2x16x256xf32, #tpu.memory_space<vmem>>, vector<2x16x128xf32>
    %2 = arith.addf %0, %1 : vector<2x16x128xf32>
    %cst = arith.constant dense<0.000000e+00> : vector<2x16xf32>
    %3 = vector.multi_reduction <add>, %2, %cst [2] : vector<2x16x128xf32> to vector<2x16xf32>
    %cst_4 = arith.constant 3.906250e-03 : f32
    %4 = vector.broadcast %cst_4 : f32 to vector<2x16xf32>
    %5 = arith.mulf %3, %4 : vector<2x16xf32>
    %c0_5 = arith.constant 0 : index
    %c0_6 = arith.constant 0 : index
    %6 = vector.load %arg2[%c0_5, %c0_6] : memref<16x16xf32, #tpu.memory_space<vmem>>, vector<16x16xf32>
    %cst_7 = arith.constant dense<0.000000e+00> : vector<2x16xf32>
    %7 = tpu.matmul %5, %6, %cst_7 {dimension_numbers = #tpu.dot_dimension_numbers<[1], [0], [0], [1], [0, 0, 1, 1], [], []>} : vector<2x16xf32>, vector<16x16xf32>, vector<2x16xf32> -> vector<2x16xf32>
    %cst_8 = arith.constant dense<0.000000e+00> : vector<2xf32>
    %8 = vector.multi_reduction <add>, %7, %cst_8 [1] : vector<2x16xf32> to vector<2xf32>
    %9 = vector.shape_cast %8 : vector<2xf32> to vector<2x1xf32>
    %cst_9 = arith.constant 1.600000e+01 : f32
    %10 = vector.broadcast %cst_9 : f32 to vector<2x1xf32>
    %11 = arith.divf %9, %10 : vector<2x1xf32>
    %12 = vector.broadcast %11 : vector<2x1xf32> to vector<2x16xf32>
    %13 = arith.subf %7, %12 : vector<2x16xf32>
    %14 = vector.broadcast %11 : vector<2x1xf32> to vector<2x16xf32>
    %15 = arith.subf %7, %14 : vector<2x16xf32>
    %16 = arith.mulf %13, %15 : vector<2x16xf32>
    %cst_10 = arith.constant dense<0.000000e+00> : vector<2xf32>
    %17 = vector.multi_reduction <add>, %16, %cst_10 [1] : vector<2x16xf32> to vector<2xf32>
    %18 = vector.shape_cast %17 : vector<2xf32> to vector<2x1xf32>
    %cst_11 = arith.constant 1.600000e+01 : f32
    %19 = vector.broadcast %cst_11 : f32 to vector<2x1xf32>
    %20 = arith.divf %18, %19 : vector<2x1xf32>
    %21 = vector.broadcast %11 : vector<2x1xf32> to vector<2x16xf32>
    %22 = arith.subf %7, %21 : vector<2x16xf32>
    %cst_12 = arith.constant 9.99999974E-6 : f32
    %23 = vector.broadcast %cst_12 : f32 to vector<2x1xf32>
    %24 = arith.addf %20, %23 : vector<2x1xf32>
    %25 = math.rsqrt %24 : vector<2x1xf32>
    %26 = vector.broadcast %25 : vector<2x1xf32> to vector<2x16xf32>
    %27 = arith.mulf %22, %26 : vector<2x16xf32>
    %c0_13 = arith.constant 0 : index
    %c0_14 = arith.constant 0 : index
    %28 = vector.load %arg3[%c0_13, %c0_14] : memref<1x16xf32, #tpu.memory_space<vmem>>, vector<1x16xf32>
    %29 = vector.broadcast %28 : vector<1x16xf32> to vector<2x16xf32>
    %30 = arith.mulf %27, %29 : vector<2x16xf32>
    %c0_15 = arith.constant 0 : index
    %c0_16 = arith.constant 0 : index
    %31 = vector.load %arg4[%c0_15, %c0_16] : memref<1x16xf32, #tpu.memory_space<vmem>>, vector<1x16xf32>
    %32 = vector.broadcast %31 : vector<1x16xf32> to vector<2x16xf32>
    %33 = arith.addf %30, %32 : vector<2x16xf32>
    %cst_17 = arith.constant 0.000000e+00 : f32
    %34 = vector.broadcast %cst_17 : f32 to vector<2x16xf32>
    %35 = arith.maximumf %33, %34 : vector<2x16xf32>
    %c0_18 = arith.constant 0 : index
    %c0_19 = arith.constant 0 : index
    %36 = vector.load %arg5[%c0_18, %c0_19] : memref<16x128xf32, #tpu.memory_space<vmem>>, vector<16x128xf32>
    %cst_20 = arith.constant dense<0.000000e+00> : vector<2x128xf32>
    %37 = tpu.matmul %35, %36, %cst_20 {dimension_numbers = #tpu.dot_dimension_numbers<[1], [0], [0], [1], [0, 0, 1, 1], [], []>} : vector<2x16xf32>, vector<16x128xf32>, vector<2x128xf32> -> vector<2x128xf32>
    %c0_21 = arith.constant 0 : index
    %c0_22 = arith.constant 0 : index
    %38 = vector.load %arg6[%c0_21, %c0_22] : memref<1x128xf32, #tpu.memory_space<vmem>>, vector<1x128xf32>
    %39 = vector.broadcast %38 : vector<1x128xf32> to vector<2x128xf32>
    %40 = arith.addf %37, %39 : vector<2x128xf32>
    %cst_23 = arith.constant 1.000000e+00 : f32
    %41 = vector.broadcast %cst_23 : f32 to vector<2x128xf32>
    %42 = arith.mulf %40, %41 : vector<2x128xf32>
    %43 = arith.negf %42 : vector<2x128xf32>
    %44 = math.exp %43 : vector<2x128xf32>
    %cst_24 = arith.constant 1.000000e+00 : f32
    %45 = vector.broadcast %cst_24 : f32 to vector<2x128xf32>
    %46 = arith.addf %45, %44 : vector<2x128xf32>
    %47 = arith.divf %45, %46 : vector<2x128xf32>
    %48 = tpu.iota {dimensions = array<i32: 1>} : vector<2x128xi32>
    %c57_i32 = arith.constant 57 : i32
    %49 = vector.broadcast %c57_i32 : i32 to vector<2x128xi32>
    %50 = arith.cmpi sge, %48, %49 : vector<2x128xi32>
    %c61_i32 = arith.constant 61 : i32
    %51 = vector.broadcast %c61_i32 : i32 to vector<2x128xi32>
    %52 = arith.cmpi slt, %48, %51 : vector<2x128xi32>
    %53 = arith.andi %50, %52 : vector<2x128xi1>
    %cst_25 = arith.constant -1.000000e+30 : f32
    %54 = vector.broadcast %cst_25 : f32 to vector<2x128xf32>
    %55 = arith.select %53, %42, %54 : vector<2x128xi1>, vector<2x128xf32>
    %cst_26 = arith.constant dense<0xFF800000> : vector<2xf32>
    %56 = vector.multi_reduction <maximumf>, %55, %cst_26 [1] : vector<2x128xf32> to vector<2xf32>
    %57 = vector.shape_cast %56 : vector<2xf32> to vector<2x1xf32>
    %58 = vector.broadcast %57 : vector<2x1xf32> to vector<2x128xf32>
    %59 = arith.subf %55, %58 : vector<2x128xf32>
    %60 = math.exp %59 : vector<2x128xf32>
    %cst_27 = arith.constant 0.000000e+00 : f32
    %61 = vector.broadcast %cst_27 : f32 to vector<2x128xf32>
    %62 = arith.select %53, %60, %61 : vector<2x128xi1>, vector<2x128xf32>
    %cst_28 = arith.constant dense<0.000000e+00> : vector<2xf32>
    %63 = vector.multi_reduction <add>, %62, %cst_28 [1] : vector<2x128xf32> to vector<2xf32>
    %64 = vector.shape_cast %63 : vector<2xf32> to vector<2x1xf32>
    %65 = vector.broadcast %64 : vector<2x1xf32> to vector<2x128xf32>
    %66 = arith.divf %62, %65 : vector<2x128xf32>
    %67 = arith.select %53, %66, %47 : vector<2x128xi1>, vector<2x128xf32>
    %c0_29 = arith.constant 0 : index
    %c0_30 = arith.constant 0 : index
    %68 = vector.load %arg7[%c0_29, %c0_30] : memref<2x128xf32, #tpu.memory_space<vmem>>, vector<2x128xf32>
    tpu.vector_store %arg7[%c0_29, %c0_30], %67 {strides = array<i32>} : memref<2x128xf32, #tpu.memory_space<vmem>>, vector<2x128xf32>,
    return
  }
  func.func @transform_0(%arg0: i32) -> (i32, i32, i32) {
    %c0_i32 = arith.constant 0 : i32
    %c0_i32_0 = arith.constant 0 : i32
    %c0_i32_1 = arith.constant 0 : i32
    return %arg0, %c0_i32, %c0_i32_0 : i32, i32, i32
  }
  func.func @transform_1(%arg0: i32) -> (i32, i32) {
    %c0_i32 = arith.constant 0 : i32
    %c0_i32_0 = arith.constant 0 : i32
    %c0_i32_1 = arith.constant 0 : i32
    return %c0_i32, %c0_i32_0 : i32, i32
  }
  func.func @transform_2(%arg0: i32) -> (i32, i32) {
    %c0_i32 = arith.constant 0 : i32
    %c0_i32_0 = arith.constant 0 : i32
    %c0_i32_1 = arith.constant 0 : i32
    return %c0_i32, %c0_i32_0 : i32, i32
  }
  func.func @transform_3(%arg0: i32) -> (i32, i32) {
    %c0_i32 = arith.constant 0 : i32
    %c0_i32_0 = arith.constant 0 : i32
    %c0_i32_1 = arith.constant 0 : i32
    return %c0_i32, %c0_i32_0 : i32, i32
  }
  func.func @transform_4(%arg0: i32) -> (i32, i32) {
    %c0_i32 = arith.constant 0 : i32
    %c0_i32_0 = arith.constant 0 : i32
    %c0_i32_1 = arith.constant 0 : i32
    return %c0_i32, %c0_i32_0 : i32, i32
  }
  func.func @transform_5(%arg0: i32) -> (i32, i32) {
    %c0_i32 = arith.constant 0 : i32
    %c0_i32_0 = arith.constant 0 : i32
    %c0_i32_1 = arith.constant 0 : i32
    return %c0_i32, %c0_i32_0 : i32, i32
  }
  func.func @transform_6(%arg0: i32) -> (i32, i32) {
    %c0_i32 = arith.constant 0 : i32
    %c0_i32_0 = arith.constant 0 : i32
    return %arg0, %c0_i32 : i32, i32
  }
}

</mosaic_0001>

<llo_original>
// kernel: attention_forward.1
$region0: #{attention_forward.1}
  #allocation0 [shape = 'u32[]', space=smem, size = 0x4, offset = 0x4, fixed_abs, tag = 'smem constant byte address 0x4 - core index']
  #allocation1 [shape = 'u32[144,128]{1,0:T(1,128)}', space=vmem, size = 0x12000, scoped, tag = 'internal scratch']
  %s0 = inlined_call_operand.vmem [shape: f32[2,16,256], index: 0, kind: input, shape index: {}]
  %s1 = inlined_call_operand.vmem [shape: f32[16,16], index: 1, kind: input, shape index: {}]
  %s2 = inlined_call_operand.vmem [shape: f32[1,16], index: 2, kind: input, shape index: {}]
  %s3 = inlined_call_operand.vmem [shape: f32[1,16], index: 3, kind: input, shape index: {}]
  %s4 = inlined_call_operand.vmem [shape: f32[16,128], index: 4, kind: input, shape index: {}]
  %s5 = inlined_call_operand.vmem [shape: f32[1,128], index: 5, kind: input, shape index: {}]
  %s6 = inlined_call_operand.vmem [shape: f32[2,128], index: 6, kind: output, shape index: {}]
  %s7 = sld [smem:[#allocation0]]
  $region34: #{attention_forward.1} parent=0
    _
  %s9 = ssub.s32 1, %s7
  %s10 = scalar_select 0, %s9, %s7
  // Predicated region
  $region2: #{attention_forward.1} parent=0 // pred_check
    _
  $region3: #{attention_forward.1} parent=0 // pred_check_branch
    %12 = sbr.rel (0) target = $region5
  $region4: #{attention_forward.1} parent=0 // pred_region
    _
  $region5: #{attention_forward.1} parent=0 // pred_fallthru
    _
  // Predicated region
  $region6: #{attention_forward.1} parent=0 // pred_check
    _
  $region7: #{attention_forward.1} parent=0 // pred_check_branch
    %14 = sbr.rel (0) target = $region9
  $region8: #{attention_forward.1} parent=0 // pred_region
    _
  $region9: #{attention_forward.1} parent=0 // pred_fallthru
    _
  // Predicated region
  $region10: #{attention_forward.1} parent=0 // pred_check
    _
  $region11: #{attention_forward.1} parent=0 // pred_check_branch
    %16 = sbr.rel (0) target = $region13
  $region12: #{attention_forward.1} parent=0 // pred_region
    _
  $region13: #{attention_forward.1} parent=0 // pred_fallthru
    _
  // Predicated region
  $region14: #{attention_forward.1} parent=0 // pred_check
    _
  $region15: #{attention_forward.1} parent=0 // pred_check_branch
    %18 = sbr.rel (0) target = $region17
  $region16: #{attention_forward.1} parent=0 // pred_region
    _
  $region17: #{attention_forward.1} parent=0 // pred_fallthru
    _
  // Predicated region
  $region18: #{attention_forward.1} parent=0 // pred_check
    _
  $region19: #{attention_forward.1} parent=0 // pred_check_branch
    %20 = sbr.rel (0) target = $region21
  $region20: #{attention_forward.1} parent=0 // pred_region
    _
  $region21: #{attention_forward.1} parent=0 // pred_fallthru
    _
  // Predicated region
  $region22: #{attention_forward.1} parent=0 // pred_check
    _
  $region23: #{attention_forward.1} parent=0 // pred_check_branch
    %22 = sbr.rel (0) target = $region25
  $region24: #{attention_forward.1} parent=0 // pred_region
    _
  $region25: #{attention_forward.1} parent=0 // pred_fallthru
    _
  %v23 = vld [vmem:[%s0] sm:$0xff]
  %v24 = vld [vmem:[%s0 + $0x10] sm:$0xff]
  %v25 = vld [vmem:[%s0 + $0x20] sm:$0xff]
  %v26 = vld [vmem:[%s0 + $0x30] sm:$0xff]
  %v27 = vld [vmem:[%s0 + $0x8] sm:$0xff]
  %v28 = vld [vmem:[%s0 + $0x18] sm:$0xff]
  %v29 = vld [vmem:[%s0 + $0x28] sm:$0xff]
  %v30 = vld [vmem:[%s0 + $0x38] sm:$0xff]
  %v31 = vadd.f32 %v23, %v27
  %v32 = vadd.f32 %v24, %v28
  %v33 = vadd.f32 %v25, %v29
  %v34 = vadd.f32 %v26, %v30
  %35 = vadd.xlane.f32.xlu0 %v31
  %v36 = vpop.xlane.xlu0 %35
  %37 = vadd.xlane.f32.xlu0 %v32
  %v38 = vpop.xlane.xlu0 %37
  %39 = vadd.xlane.f32.xlu0 %v33
  %v40 = vpop.xlane.xlu0 %39
  %41 = vadd.xlane.f32.xlu0 %v34
  %v42 = vpop.xlane.xlu0 %41
  %v43 = vmul.f32 %v36, 0.00390625
  %v44 = vmul.f32 %v38, 0.00390625
  %v45 = vmul.f32 %v40, 0.00390625
  %v46 = vmul.f32 %v42, 0.00390625
  %v47 = vld [vmem:[%s1] sm:$0xff]
  %v48 = vld [vmem:[%s1 + $0x8] sm:$0xff]
  %v53 = vlaneseq
  %v54 = vand.u32 %v53, 127
  %v55 = vlaneseq
  %v56 = vshrl.u32 %v55, 7
  %v57 = vsub.s32 %v54, %v56
  %v58 = vrot.slane %v43, %v57
  %v59 = vadd.s32 %v54, 4294967288
  %v60 = vlaneseq
  %v61 = vshrl.u32 %v60, 7
  %v62 = vsub.s32 %v59, %v61
  %v63 = vrot.slane %v44, %v62
  %vm64 = vcmask 130112
  %v65 = vsel %vm64, %v63, %v58
  %v66 = vlaneseq
  %v67 = vshrl.u32 %v66, 7
  %v68 = vsub.s32 %v54, %v67
  %v69 = vrot.slane %v45, %v68
  %v70 = vlaneseq
  %v71 = vshrl.u32 %v70, 7
  %v72 = vsub.s32 %v59, %v71
  %v73 = vrot.slane %v46, %v72
  %v74 = vsel %vm64, %v73, %v69
  %vm75 = vcmask 1041409
  %v76 = vsel %vm75, %v74, %v65
  %vm77 = vcmask 130048
  %v78 = vsel %vm77, %v76, 0
  %80 = vmatprep.subr.mxu0 0.0
  %81 = vmatpush1.msra.mxu0 %v47
  %82 = vmatprep.subr.mxu0 0.0
  %83 = vmatpush1.msra.mxu0 %v48
  %84 = vmatprep.subr.mxu0 0.0
  %85 = vmatpush1.msra.mxu0 0.0
  %86 = vmatprep.subr.mxu0 0.0
  %87 = vmatpush1.msra.mxu0 0.0
  %88 = vmatprep.subr.mxu0 0.0
  %89 = vmatpush1.msra.mxu0 0.0
  %90 = vmatprep.subr.mxu0 0.0
  %91 = vmatpush1.msra.mxu0 0.0
  %92 = vmatprep.subr.mxu0 0.0
  %93 = vmatpush1.msra.mxu0 0.0
  %94 = vmatprep.subr.mxu0 0.0
  %95 = vmatpush1.msra.mxu0 0.0
  %96 = vmatprep.subr.mxu0 0.0
  %97 = vmatpush1.msra.mxu0 0.0
  %98 = vmatprep.subr.mxu0 0.0
  %99 = vmatpush1.msra.mxu0 0.0
  %100 = vmatprep.subr.mxu0 0.0
  %101 = vmatpush1.msra.mxu0 0.0
  %102 = vmatprep.subr.mxu0 0.0
  %103 = vmatpush1.msra.mxu0 0.0
  %104 = vmatprep.subr.mxu0 0.0
  %105 = vmatpush1.msra.mxu0 0.0
  %106 = vmatprep.subr.mxu0 0.0
  %107 = vmatpush1.msra.mxu0 0.0
  %108 = vmatprep.subr.mxu0 0.0
  %109 = vmatpush1.msra.mxu0 0.0
  %110 = vmatprep.subr.mxu0 0.0
  %111 = vmatpush1.msra.mxu0 0.0
  %112 = vmatprep.subr.mxu0 0.0
  %113 = vmatpush1.msra.mxu0 0.0
  %114 = vmatprep.subr.mxu0 0.0
  %115 = vmatpush1.msra.mxu0 0.0
  %116 = vmatprep.subr.mxu0 0.0
  %117 = vmatpush1.msra.mxu0 0.0
  %118 = vmatprep.subr.mxu0 0.0
  %119 = vmatpush1.msra.mxu0 0.0
  %120 = vmatprep.subr.mxu0 0.0
  %121 = vmatpush1.msra.mxu0 0.0
  %122 = vmatprep.subr.mxu0 0.0
  %123 = vmatpush1.msra.mxu0 0.0
  %124 = vmatprep.subr.mxu0 0.0
  %125 = vmatpush1.msra.mxu0 0.0
  %126 = vmatprep.subr.mxu0 0.0
  %127 = vmatpush1.msra.mxu0 0.0
  %128 = vmatprep.subr.mxu0 0.0
  %129 = vmatpush1.msra.mxu0 0.0
  %130 = vmatprep.subr.mxu0 0.0
  %131 = vmatpush1.msra.mxu0 0.0
  %132 = vmatprep.subr.mxu0 0.0
  %133 = vmatpush1.msra.mxu0 0.0
  %134 = vmatprep.subr.mxu0 0.0
  %135 = vmatpush1.msra.mxu0 0.0
  %136 = vmatprep.subr.mxu0 0.0
  %137 = vmatpush1.msra.mxu0 0.0
  %138 = vmatprep.subr.mxu0 0.0
  %139 = vmatpush1.msra.mxu0 0.0
  %140 = vmatprep.subr.mxu0 0.0
  %141 = vmatpush1.msra.mxu0 0.0
  %142 = vmatprep.subr.mxu0 0.0
  %143 = vmatpush1.msra.mxu0 0.0
  %144 = vmatprep.mubr.f32.mxu0 0.0
  %145 = vmatmul.mubr.f32.gmra.mrb[0].mxu0 %v78
  %v146 = vpop.f32.mrb[0].mxu0
  %v147 = vadd.f32 0.0, %v146
  %v148 = vpop.f32.mrb[0].mxu0
  %149 = vdwg.mxu0
  %vm150 = vcmask 123904
  %v151 = vsel %vm150, %v147, 0.0
  %152 = vadd.xlane.f32.xlu0 %v151
  %v153 = vpop.xlane.xlu0 %152
  %v154 = vrcp.pop 16.0
  %v155 = vmul.f32 %v153, %v154
  %v156 = vsub.f32 %v147, %v155
  %v157 = vmul.f32 %v156, %v156
  %v158 = vsel %vm150, %v157, 0.0
  %159 = vadd.xlane.f32.xlu0 %v158
  %v160 = vpop.xlane.xlu0 %159
  %v161 = vmul.f32 %v160, %v154
  %v162 = vadd.f32 %v161, 1e-05
  %v163 = vrsqrt.pop %v162
  %v164 = vmul.f32 %v156, %v163
  %v165 = vld [vmem:[%s2] sm:$0x1]
  %v167 = vlaneseq
  %v168 = vshrl.u32 %v167, 7
  %v169 = vsub.s32 0, %v168
  %v170 = vrot.slane %v165, %v169
  %v172 = vmul.f32 %v164, %v170
  %v173 = vld [vmem:[%s3] sm:$0x1]
  %v175 = vlaneseq
  %v176 = vshrl.u32 %v175, 7
  %v177 = vsub.s32 0, %v176
  %v178 = vrot.slane %v173, %v177
  %v180 = vadd.f32 %v172, %v178
  %v181 = vmax.f32 %v180, 0.0
  %v182 = vld [vmem:[%s4] sm:$0xff]
  %v183 = vld [vmem:[%s4 + $0x8] sm:$0xff]
  %v184 = vld [vmem:[%s5] sm:$0x1]
  %v186 = vlaneseq
  %v187 = vshrl.u32 %v186, 7
  %v188 = vsub.s32 0, %v187
  %v189 = vrot.slane %v184, %v188
  %v192 = vsel %vm77, %v181, 0
  %194 = vmatprep.subr.mxu0 0.0
  %195 = vmatpush1.msra.mxu0 %v182
  %196 = vmatprep.subr.mxu0 0.0
  %197 = vmatpush1.msra.mxu0 %v183
  %198 = vmatprep.subr.mxu0 0.0
  %199 = vmatpush1.msra.mxu0 0.0
  %200 = vmatprep.subr.mxu0 0.0
  %201 = vmatpush1.msra.mxu0 0.0
  %202 = vmatprep.subr.mxu0 0.0
  %203 = vmatpush1.msra.mxu0 0.0
  %204 = vmatprep.subr.mxu0 0.0
  %205 = vmatpush1.msra.mxu0 0.0
  %206 = vmatprep.subr.mxu0 0.0
  %207 = vmatpush1.msra.mxu0 0.0
  %208 = vmatprep.subr.mxu0 0.0
  %209 = vmatpush1.msra.mxu0 0.0
  %210 = vmatprep.subr.mxu0 0.0
  %211 = vmatpush1.msra.mxu0 0.0
  %212 = vmatprep.subr.mxu0 0.0
  %213 = vmatpush1.msra.mxu0 0.0
  %214 = vmatprep.subr.mxu0 0.0
  %215 = vmatpush1.msra.mxu0 0.0
  %216 = vmatprep.subr.mxu0 0.0
  %217 = vmatpush1.msra.mxu0 0.0
  %218 = vmatprep.subr.mxu0 0.0
  %219 = vmatpush1.msra.mxu0 0.0
  %220 = vmatprep.subr.mxu0 0.0
  %221 = vmatpush1.msra.mxu0 0.0
  %222 = vmatprep.subr.mxu0 0.0
  %223 = vmatpush1.msra.mxu0 0.0
  %224 = vmatprep.subr.mxu0 0.0
  %225 = vmatpush1.msra.mxu0 0.0
  %226 = vmatprep.subr.mxu0 0.0
  %227 = vmatpush1.msra.mxu0 0.0
  %228 = vmatprep.subr.mxu0 0.0
  %229 = vmatpush1.msra.mxu0 0.0
  %230 = vmatprep.subr.mxu0 0.0
  %231 = vmatpush1.msra.mxu0 0.0
  %232 = vmatprep.subr.mxu0 0.0
  %233 = vmatpush1.msra.mxu0 0.0
  %234 = vmatprep.subr.mxu0 0.0
  %235 = vmatpush1.msra.mxu0 0.0
  %236 = vmatprep.subr.mxu0 0.0
  %237 = vmatpush1.msra.mxu0 0.0
  %238 = vmatprep.subr.mxu0 0.0
  %239 = vmatpush1.msra.mxu0 0.0
  %240 = vmatprep.subr.mxu0 0.0
  %241 = vmatpush1.msra.mxu0 0.0
  %242 = vmatprep.subr.mxu0 0.0
  %243 = vmatpush1.msra.mxu0 0.0
  %244 = vmatprep.subr.mxu0 0.0
  %245 = vmatpush1.msra.mxu0 0.0
  %246 = vmatprep.subr.mxu0 0.0
  %247 = vmatpush1.msra.mxu0 0.0
  %248 = vmatprep.subr.mxu0 0.0
  %249 = vmatpush1.msra.mxu0 0.0
  %250 = vmatprep.subr.mxu0 0.0
  %251 = vmatpush1.msra.mxu0 0.0
  %252 = vmatprep.subr.mxu0 0.0
  %253 = vmatpush1.msra.mxu0 0.0
  %254 = vmatprep.subr.mxu0 0.0
  %255 = vmatpush1.msra.mxu0 0.0
  %256 = vmatprep.subr.mxu0 0.0
  %257 = vmatpush1.msra.mxu0 0.0
  %258 = vmatprep.mubr.f32.mxu0 0.0
  %259 = vmatmul.mubr.f32.gmra.mrb[0].mxu0 %v192
  %v260 = vpop.f32.mrb[0].mxu0
  %v261 = vadd.f32 %v189, %v260
  %v262 = vpop.f32.mrb[0].mxu0
  %263 = vdwg.mxu0
  %v264 = vxor.u32 %v261, 2147483648
  %v265 = vmul.f32 %v264, 1.442695
  %v266 = vpow.pop %v265
  %v267 = vadd.f32 %v266, 1.0
  %v268 = vrcp.pop %v267
  %v269 = vmul.f32 1.0, %v268
  %vm270 = vcmp.ge.s32.totalorder %v54, 57
  %vm271 = vcmp.lt.s32.totalorder %v54, 61
  %vm272 = vmand %vm270, %vm271
  %v273 = vsel %vm272, %v261, -1e+30
  %vm274 = vcmask 1041408
  %v275 = vsel %vm274, %v273, -inf
  %276 = vmax.xlane.f32.xlu0 %v275
  %v277 = vpop.xlane.xlu0 %276
  %v278 = vsub.f32 %v273, %v277
  %v279 = vmul.f32 %v278, 1.442695
  %v280 = vpow.pop %v279
  %v281 = vsel %vm272, %v280, 0.0
  %v282 = vsel %vm274, %v281, 0.0
  %283 = vadd.xlane.f32.xlu0 %v282
  %v284 = vpop.xlane.xlu0 %283
  %v285 = vrcp.pop %v284
  %v286 = vmul.f32 %v281, %v285
  %v287 = vsel %vm272, %v286, %v269
  %288 = vst [vmem:[%s6] sm:$0x3] %v287
  // Predicated region
  $region26: #{attention_forward.1} parent=0 // pred_check
    _
  $region27: #{attention_forward.1} parent=0 // pred_check_branch
    %290 = sbr.rel (0) target = $region29
  $region28: #{attention_forward.1} parent=0 // pred_region
    _
  $region29: #{attention_forward.1} parent=0 // pred_fallthru
    _
  // Predicated region
  $region30: #{attention_forward.1} parent=0 // pred_check
    _
  $region31: #{attention_forward.1} parent=0 // pred_check_branch
    %292 = sbr.rel (0) target = $region33
  $region32: #{attention_forward.1} parent=0 // pred_region
    _
  $region33: #{attention_forward.1} parent=0 // pred_fallthru
    _

</llo_original>
